<compile_context>
chip_gen: v5e
topology: v5e:2x2
jax: 0.10.0
libtpu: 0.0.40
codegen_flags: <defaults>
</compile_context>

<pallas_src>
import functools

import numpy as np
import jax
import jax.numpy as jnp
from jax.experimental import pallas as pl
from jax.experimental.pallas import tpu as pltpu

# Lane-dense slab width for the padded fallback path (multiple of 128).
_WIDTH = 512
# Cap the per-step input block at ~8 MiB.
_MAX_BLOCK_BYTES = 8 * 1024 * 1024
# Misaligned tensors up to this many bytes run as a single (1, n) block.
_SINGLE_BLOCK_BYTES = 4 * 1024 * 1024


def _rescale_kernel(params_ref, x_ref, o_ref):
    """Elementwise (x - input_min) * ratio + output_min, params in SMEM."""
    input_min = params_ref[0]
    ratio = params_ref[1]
    output_min = params_ref[2]
    x = x_ref[...].astype(jnp.float32)
    o_ref[...] = ((x - input_min) * ratio + output_min).astype(o_ref.dtype)


def _round_up(n, m):
    return ((n + m - 1) // m) * m


def _choose_width(n):
    """Largest lane-aligned width that evenly divides n (no padding needed)."""
    for w in (512, 256, 128):
        if n % w == 0:
            return w
    return None


@functools.partial(jax.jit, static_argnames=("out_dtype",))
def _rescale_2d(x2d, params, out_dtype):
    """x2d: (rows, width) with width a multiple of 128 or == full dim."""
    rows, width = x2d.shape
    in_itemsize = jnp.dtype(x2d.dtype).itemsize

    # Multi-MiB blocks amortize per-grid-step pipeline overhead; capped so the
    # double-buffered in+out footprint stays well under the 48 MiB scoped-VMEM
    # request below (headroom inside v7x's 64 MiB physical VMEM per TC).
    cap_rows = max(8, (_MAX_BLOCK_BYTES // (width * in_itemsize)) // 8 * 8)
    # Split the row grid ~evenly in two (rounded to a sublane multiple) so
    # dimension_semantics=("parallel",) hands both v7x TensorCores balanced
    # work whenever the tensor is big enough to matter.
    half_rows = _round_up(pl.cdiv(rows, 2), 8)
    block_rows = min(cap_rows, half_rows)
    if block_rows >= rows:
        block_rows = rows  # full-extent block: always legal, grid = 1
    grid = (pl.cdiv(rows, block_rows),)

    return pl.pallas_call(
        _rescale_kernel,
        out_shape=jax.ShapeDtypeStruct((rows, width), out_dtype),
        grid_spec=pltpu.PrefetchScalarGridSpec(
            num_scalar_prefetch=0,
            grid=grid,
            in_specs=[
                # (3,) f32 parameters live in SMEM, shared by all grid steps.
                pl.BlockSpec(memory_space=pltpu.MemorySpace.SMEM),
                pl.BlockSpec((block_rows, width), lambda i: (i, 0)),
            ],
            out_specs=pl.BlockSpec((block_rows, width), lambda i: (i, 0)),
        ),
        compiler_params=pltpu.CompilerParams(
            dimension_semantics=("parallel",),
            vmem_limit_bytes=48 * 1024 * 1024,
        ),
    )(params, x2d)


class RescaleLayer:
    """JAX/Pallas equivalent of the PyTorch RescaleLayer."""

    def __init__(self, input_min, input_max, output_min, output_max):
        # Mirror the PyTorch module: deltas/ratio computed on the original
        # (double-precision) values, then stored as float32 parameters.
        # inf/NaN when input_min == input_max is preserved (no constant
        # folding into the kernel).
        delta_input = np.float64(input_max) - np.float64(input_min)
        delta_output = np.float64(output_max) - np.float64(output_min)
        with np.errstate(divide="ignore", invalid="ignore"):
            ratio = delta_output / delta_input
        self._params = jnp.array(
            [np.float32(input_min), np.float32(ratio), np.float32(output_min)],
            dtype=jnp.float32,
        )

    def __call__(self, x):
        # PyTorch promotes the input against the float32 parameters.
        out_dtype = jnp.promote_types(x.dtype, jnp.float32)
        orig_shape = x.shape
        n = x.size
        if n == 0:
            return jnp.zeros(orig_shape, out_dtype)

        flat = x.reshape(-1)  # metadata-only for contiguous layouts

        width = _choose_width(n)
        if width is not None:
            # Lane-aligned element count: free reshape, no pad, no slice.
            x2d = flat.reshape(n // width, width)
            out2d = _rescale_2d(x2d, self._params, out_dtype)
            return out2d.reshape(orig_shape)

        in_bytes = n * jnp.dtype(x.dtype).itemsize
        out_bytes = n * jnp.dtype(out_dtype).itemsize
        if max(in_bytes, out_bytes) <= _SINGLE_BLOCK_BYTES:
            # Misaligned but small: a single full-extent (1, n) block is legal
            # for any n and avoids the pad + trailing-slice HBM round trips.
            x2d = flat.reshape(1, n)
            out2d = _rescale_2d(x2d, self._params, out_dtype)
            return out2d.reshape(orig_shape)

        # Rare: large AND not a multiple of 128 elements -> pad fallback.
        # TODO(synk): handle the <128-element ragged tail with a masked edge
        # store instead of padding, to keep this path at HBM roofline.
        padded_n = _round_up(n, _WIDTH)
        flat = jnp.pad(flat, (0, padded_n - n))
        x2d = flat.reshape(padded_n // _WIDTH, _WIDTH)
        out2d = _rescale_2d(x2d, self._params, out_dtype)
        return out2d.reshape(-1)[:n].reshape(orig_shape)


if __name__ == "__main__":
    key = jax.random.PRNGKey(0)
    # NCHW input, small shapes: batch=2, channels=4, spatial=16x16
    x = jax.random.uniform(key, (2, 4, 16, 16), dtype=jnp.float32,
                           minval=-1.0, maxval=3.0)

    # Rescale from input range [-1, 3] to output range [0, 1]
    layer = RescaleLayer(input_min=-1.0, input_max=3.0,
                         output_min=0.0, output_max=1.0)

    out = jax.block_until_ready(layer(x))

    # Reference check (plain JAX, PyTorch formula).
    ratio = (1.0 - 0.0) / (3.0 - (-1.0))
    ref = (x - (-1.0)) * jnp.float32(ratio) + 0.0
    assert out.shape == x.shape and out.dtype == jnp.float32
    assert jnp.allclose(out, ref, atol=1e-6, rtol=1e-6)

    print("KERNEL_OK")
</pallas_src>

<mosaic_0001>
module attributes {stable_mosaic.version = 11 : i64} {
  func.func @_rescale_kernel(%arg0: i32, %arg1: memref<3xf32, #tpu.memory_space<smem>>, %arg2: memref<4x512xf32, #tpu.memory_space<vmem>>, %arg3: memref<4x512xf32, #tpu.memory_space<vmem>>) attributes {dimension_semantics = [#tpu.dimension_semantics<parallel>], iteration_bounds = array<i64: 1>, scalar_prefetch = 0 : i64, scratch_operands = 0 : i64, tpu.core_type = #tpu.core_type<tc>, window_params = [{transform_indices = @transform_0, window_bounds = array<i64: 3>}, {transform_indices = @transform_1, window_bounds = array<i64: 4, 512>}, {transform_indices = @transform_2, window_bounds = array<i64: 4, 512>}]} {
    %c0 = arith.constant 0 : index
    %0 = memref.load %arg1[%c0] : memref<3xf32, #tpu.memory_space<smem>>
    %c1 = arith.constant 1 : index
    %1 = memref.load %arg1[%c1] : memref<3xf32, #tpu.memory_space<smem>>
    %c2 = arith.constant 2 : index
    %2 = memref.load %arg1[%c2] : memref<3xf32, #tpu.memory_space<smem>>
    %c0_0 = arith.constant 0 : index
    %c0_1 = arith.constant 0 : index
    %3 = vector.load %arg2[%c0_0, %c0_1] : memref<4x512xf32, #tpu.memory_space<vmem>>, vector<4x512xf32>
    %4 = vector.broadcast %0 : f32 to vector<4x512xf32>
    %5 = arith.subf %3, %4 : vector<4x512xf32>
    %6 = vector.broadcast %1 : f32 to vector<4x512xf32>
    %7 = arith.mulf %5, %6 : vector<4x512xf32>
    %8 = vector.broadcast %2 : f32 to vector<4x512xf32>
    %9 = arith.addf %7, %8 : vector<4x512xf32>
    %c0_2 = arith.constant 0 : index
    %c0_3 = arith.constant 0 : index
    %10 = vector.load %arg3[%c0_2, %c0_3] : memref<4x512xf32, #tpu.memory_space<vmem>>, vector<4x512xf32>
    tpu.vector_store %arg3[%c0_2, %c0_3], %9 {strides = array<i32>} : memref<4x512xf32, #tpu.memory_space<vmem>>, vector<4x512xf32>,
    return
  }
  func.func @transform_0(%arg0: i32) -> i32 {
    %c0_i32 = arith.constant 0 : i32
    %c0_i32_0 = arith.constant 0 : i32
    return %c0_i32 : i32
  }
  func.func @transform_1(%arg0: i32) -> (i32, i32) {
    %c0_i32 = arith.constant 0 : i32
    %c0_i32_0 = arith.constant 0 : i32
    return %arg0, %c0_i32 : i32, i32
  }
  func.func @transform_2(%arg0: i32) -> (i32, i32) {
    %c0_i32 = arith.constant 0 : i32
    %c0_i32_0 = arith.constant 0 : i32
    return %arg0, %c0_i32 : i32, i32
  }
}

</mosaic_0001>

<llo_original>
// kernel: _rescale_2d.1
$region0: #{_rescale_2d.1}
  #allocation0 [shape = 'u32[]', space=smem, size = 0x4, offset = 0x4, fixed_abs, tag = 'smem constant byte address 0x4 - core index']
  #allocation1 [shape = 'u32[72,128]{1,0:T(1,128)}', space=vmem, size = 0x9000, scoped, tag = 'internal scratch']
  %s0 = inlined_call_operand.hbm [shape: f32[3], index: 0, kind: input, shape index: {}]
  %s1 = inlined_call_operand.hbm [shape: f32[4,512], index: 1, kind: input, shape index: {}]
  %s2 = inlined_call_operand.hbm [shape: f32[4,512], index: 2, kind: output, shape index: {}]
  %s3 = sld [smem:[#allocation0]]
  $region26: #{_rescale_2d.1} parent=0
    _
  %s5 = ssub.s32 1, %s3
  %s6 = scalar_select 0, %s5, %s3
  $region1: #{_rescale_2d.1} parent=0
    #allocation2 [shape = 'u8[512]{0}', space=smem, size = 0x200, scoped, tag = 'input window, operand 0, single buffered']
    #allocation3 [shape = 's32[1]{0}', space=sflag, size = 0x4, scoped, tag = 'scoped memory for _rescale_2d.1']
    #allocation4 [shape = 's32[1]{0}', space=sflag, size = 0x4, scoped, tag = 'scoped memory for _rescale_2d.1']
    #allocation5 [shape = 's32[1]{0}', space=sflag, size = 0x4, scoped, tag = 'scoped memory for _rescale_2d.1']
    #allocation6 [shape = 'u8[8192]{0}', space=vmem, size = 0x2000, scoped, tag = 'input window, operand 1, single buffered']
    #allocation7 [shape = 'u8[8192]{0}', space=vmem, size = 0x2000, scoped, tag = 'output window, operand 0, single buffered']
    %7 = vsyncpa [#allocation5], 0
    %8 = vsyncpa [#allocation3], 0
    %9 = vsyncpa [#allocation4], 0
    // Predicated region
    $region2: #{_rescale_2d.1} parent=1 // pred_check
      _
    $region3: #{_rescale_2d.1} parent=1 // pred_check_branch
      %11 = sbr.rel (0) target = $region5
    $region4: #{_rescale_2d.1} parent=1 // pred_region
      %13 = vsyncadd [#allocation5], 0
      %s15 = sshll.u32 %s0, 4
      %s16 = int_to_ptr.hbm [resolvable:$true] %s15
      %18 = dma.hbm_to_smem %s16, 16, [#allocation2], [#allocation5]
    $region5: #{_rescale_2d.1} parent=1 // pred_fallthru
      _
    // Predicated region
    $region6: #{_rescale_2d.1} parent=1 // pred_check
      _
    $region7: #{_rescale_2d.1} parent=1 // pred_check_branch
      %20 = sbr.rel (0) target = $region9
    $region8: #{_rescale_2d.1} parent=1 // pred_region
      %22 = vsyncadd [#allocation3], 0
      %s24 = sshll.u32 %s1, 4
      %s25 = int_to_ptr.hbm [resolvable:$true] %s24
      %s26 = sshll.u32 [#allocation6], 4
      %s27 = int_to_ptr.vmem [resolvable:$true] %s26
      %29 = dma.hbm_to_vmem [thread:$0]  %s25, 256, %s27, [#allocation3]
    $region9: #{_rescale_2d.1} parent=1 // pred_fallthru
      _
    // Predicated region
    $region10: #{_rescale_2d.1} parent=1 // pred_check
      _
    $region11: #{_rescale_2d.1} parent=1 // pred_check_branch
      %31 = sbr.rel (0) target = $region13
    $region12: #{_rescale_2d.1} parent=1 // pred_region
      %33 = dma.done [#allocation5], 16
    $region13: #{_rescale_2d.1} parent=1 // pred_fallthru
      _
    // Predicated region
    $region14: #{_rescale_2d.1} parent=1 // pred_check
      _
    $region15: #{_rescale_2d.1} parent=1 // pred_check_branch
      %35 = sbr.rel (0) target = $region17
    $region16: #{_rescale_2d.1} parent=1 // pred_region
      %37 = dma.done [#allocation3], 256
    $region17: #{_rescale_2d.1} parent=1 // pred_fallthru
      _
    %38 = sfence
    %s39 = sld [smem:[#allocation2]]
    %s40 = sld [smem:[#allocation2 + $0x1]]
    %s41 = sld [smem:[#allocation2 + $0x2]]
    %v42 = vld [vmem:[#allocation6] sm:$0xff]
    %v43 = vld [vmem:[#allocation6 + $0x8] sm:$0xff]
    %v44 = vstv %s39
    %v45 = vsub.f32 %v42, %v44
    %v46 = vsub.f32 %v43, %v44
    %v47 = vstv %s40
    %v48 = vmul.f32 %v45, %v47
    %v49 = vmul.f32 %v46, %v47
    %v50 = vstv %s41
    %v51 = vadd.f32 %v48, %v50
    %v52 = vadd.f32 %v49, %v50
    %53 = vst [vmem:[#allocation7] sm:$0xff] %v51
    %54 = vst [vmem:[#allocation7 + $0x8] sm:$0xff] %v52
    // Predicated region
    $region18: #{_rescale_2d.1} parent=1 // pred_check
      _
    $region19: #{_rescale_2d.1} parent=1 // pred_check_branch
      %56 = sbr.rel (0) target = $region21
    $region20: #{_rescale_2d.1} parent=1 // pred_region
      %58 = vsyncadd [#allocation4], 0
      %s60 = sshll.u32 [#allocation7], 4
      %s61 = int_to_ptr.vmem [resolvable:$true] %s60
      %s62 = sshll.u32 %s2, 4
      %s63 = int_to_ptr.hbm [resolvable:$true] %s62
      %65 = dma.vmem_to_hbm [thread:$0]  %s61, 256, %s63, [#allocation4]
    $region21: #{_rescale_2d.1} parent=1 // pred_fallthru
      _
    // Predicated region
    $region22: #{_rescale_2d.1} parent=1 // pred_check
      _
    $region23: #{_rescale_2d.1} parent=1 // pred_check_branch
      %67 = sbr.rel (0) target = $region25
    $region24: #{_rescale_2d.1} parent=1 // pred_region
      %69 = dma.done [#allocation4], 256
    $region25: #{_rescale_2d.1} parent=1 // pred_fallthru
      _
    %70 = vsyncpa [#allocation3], 1
    %71 = vsyncpa [#allocation4], 1
    %72 = vsyncpa [#allocation5], 1

</llo_original>
